<compile_context>
chip_gen: v6e
topology: v6e:2x2x1
jax: 0.10.0
libtpu: 0.0.40
codegen_flags: <defaults>
</compile_context>

<pallas_src>
import functools
import math

import jax
import jax.numpy as jnp
from jax.experimental import pallas as pl
from jax.experimental.pallas import tpu as pltpu


_MASK_VALUE = float(jnp.finfo(jnp.float32).min)  # for masking padded kv columns


def _flash_attention_kernel(q_ref, k_ref, v_ref, o_ref, m_sc, l_sc, acc_sc,
                            *, kv_tile, seq_len, first_pad_tile, padded):
    """One grid step: (batch bb, head hh, q-tile qi, kv-tile kj)."""
    kj = pl.program_id(3)
    n_kv = pl.num_programs(3)

    # ---- per-(batch, head, q-tile) init of the flash state
    @pl.when(kj == 0)
    def _():
        m_sc[...] = jnp.full_like(m_sc, -jnp.inf)
        l_sc[...] = jnp.zeros_like(l_sc)
        acc_sc[...] = jnp.zeros_like(acc_sc)

    q = q_ref[...]                                   # (tq,  d) -- scale pre-folded
    k = k_ref[...]                                   # (tkv, d)
    v = v_ref[...]                                   # (tkv, d)

    # scores q @ k^T: contraction over dim_head, no materialized transpose
    s = jax.lax.dot_general(q, k, (((1,), (1,)), ((), ())),
                            preferred_element_type=jnp.float32)   # (tq, tkv) f32

    def online_softmax_update(scores):
        m_prev = m_sc[...]
        m_new = jnp.maximum(m_prev, jnp.max(scores, axis=-1, keepdims=True))
        alpha = jnp.exp(m_prev - m_new)
        p = jnp.exp(scores - m_new)
        l_sc[...] = alpha * l_sc[...] + jnp.sum(p, axis=-1, keepdims=True)
        acc_sc[...] = alpha * acc_sc[...] + jnp.dot(
            p.astype(v.dtype), v, preferred_element_type=jnp.float32)
        m_sc[...] = m_new

    if padded:
        # Only kv tiles at index >= seq_len // kv_tile can contain padded
        # columns; everything before that stays on the unmasked fast path.
        may_have_padding = kj >= first_pad_tile

        @pl.when(may_have_padding)
        def _():
            col = kj * kv_tile + jax.lax.broadcasted_iota(jnp.int32, s.shape, 1)
            online_softmax_update(jnp.where(col < seq_len, s, _MASK_VALUE))

        @pl.when(jnp.logical_not(may_have_padding))
        def _():
            online_softmax_update(s)
    else:
        online_softmax_update(s)

    # ---- finalize: normalize once per (batch, head, q-tile)
    @pl.when(kj == n_kv - 1)
    def _():
        inv_l = pl.reciprocal(l_sc[...], approx=True)   # EUP slot
        o_ref[...] = (acc_sc[...] * inv_l).astype(o_ref.dtype)


def _round_up(v, m):
    return ((v + m - 1) // m) * m


def _default_tiles():
    """(q_tile, kv_tile): 256/512 for v6e/v7x (256-wide MXU), 128/256 for v5e."""
    try:
        kind = jax.devices()[0].device_kind.lower()
    except Exception:  # pragma: no cover - defensive only
        kind = ""
    if "v5 lite" in kind or "v5lite" in kind or "v5e" in kind:
        return 128, 256
    return 256, 512


def flash_attention(q, k, v, *, seq_len, q_tile, kv_tile, vmem_limit_bytes=None):
    """Flash attention over pre-projected per-head q/k/v.

    q, k, v : (b, heads, n_pad, dim_head), softmax scale already folded into q.
    Returns : (b, heads, n_pad, dim_head) in q.dtype.
    """
    b, heads, n_pad, dim_head = q.shape
    n_q_tiles = n_pad // q_tile
    n_kv_tiles = n_pad // kv_tile
    padded = n_pad != seq_len

    kernel = functools.partial(
        _flash_attention_kernel,
        kv_tile=kv_tile, seq_len=seq_len,
        first_pad_tile=seq_len // kv_tile, padded=padded)

    # batch / heads / q-tiles are independent -> "parallel" (megacore / v7x
    # dual TensorCore); the kv axis is the online-softmax reduction.
    compiler_params = pltpu.CompilerParams(
        dimension_semantics=("parallel", "parallel", "parallel", "arbitrary"),
        vmem_limit_bytes=vmem_limit_bytes)

    return pl.pallas_call(
        kernel,
        out_shape=jax.ShapeDtypeStruct((b, heads, n_pad, dim_head), q.dtype),
        grid_spec=pltpu.PrefetchScalarGridSpec(
            num_scalar_prefetch=0,
            grid=(b, heads, n_q_tiles, n_kv_tiles),
            in_specs=[
                pl.BlockSpec((None, None, q_tile, dim_head),
                             lambda bb, hh, qi, kj: (bb, hh, qi, 0)),
                pl.BlockSpec((None, None, kv_tile, dim_head),
                             lambda bb, hh, qi, kj: (bb, hh, kj, 0)),
                pl.BlockSpec((None, None, kv_tile, dim_head),
                             lambda bb, hh, qi, kj: (bb, hh, kj, 0)),
            ],
            out_specs=pl.BlockSpec((None, None, q_tile, dim_head),
                                   lambda bb, hh, qi, kj: (bb, hh, qi, 0)),
            scratch_shapes=[
                pltpu.VMEM((q_tile, 1), jnp.float32),         # running max
                pltpu.VMEM((q_tile, 1), jnp.float32),         # running denominator
                pltpu.VMEM((q_tile, dim_head), jnp.float32),  # attention accumulator
            ]),
        compiler_params=compiler_params,
    )(q, k, v)


def attention_forward(x, w_qkv, w_out, b_out, *, heads, dim_head,
                      compute_dtype=jnp.bfloat16, q_tile=None, kv_tile=None,
                      vmem_limit_bytes=None):
    b, n, dim = x.shape
    inner = heads * dim_head
    assert w_qkv.shape == (dim, 3 * inner)
    assert w_out.shape == (inner, dim)
    scale = float(dim_head) ** -0.5
    out_dtype = x.dtype

    # ---- tiling: decoupled q / kv tiles, padded sequence ------------------
    dq, dkv = _default_tiles()
    q_tile = dq if q_tile is None else int(q_tile)
    kv_tile = dkv if kv_tile is None else int(kv_tile)
    tq = _round_up(min(q_tile, n), 8)
    tkv = _round_up(min(kv_tile, n), 8)
    n_pad = _round_up(n, math.lcm(tq, tkv))
    pad = n_pad - n

    # ---- QKV projection hoisted out of the kernel (one big MXU matmul) ----
    xc = x.astype(compute_dtype)
    qkv = jnp.dot(xc.reshape(b * n, dim), w_qkv.astype(compute_dtype),
                  preferred_element_type=jnp.float32)            # (b*n, 3*inner)
    q, k, v = jnp.split(qkv.reshape(b, n, 3 * inner), 3, axis=-1)
    q = q * scale                                                # fold softmax scale

    def to_heads(t):                                             # -> (b, h, n_pad, d)
        t = t.reshape(b, n, heads, dim_head).transpose(0, 2, 1, 3)
        if pad:
            t = jnp.pad(t, ((0, 0), (0, 0), (0, pad), (0, 0)))
        return t.astype(compute_dtype)

    qh, kh, vh = to_heads(q), to_heads(k), to_heads(v)

    # ---- flash-attention Pallas kernel ------------------------------------
    o = flash_attention(qh, kh, vh, seq_len=n, q_tile=tq, kv_tile=tkv,
                        vmem_limit_bytes=vmem_limit_bytes)       # (b, h, n_pad, d)

    # ---- output projection hoisted (full inner-dim MXU contraction) -------
    if pad:
        o = o[:, :, :n, :]
    o = o.transpose(0, 2, 1, 3).reshape(b, n, inner)             # 'b h n d -> b n (h d)'
    y = jnp.dot(o.astype(compute_dtype), w_out.astype(compute_dtype),
                preferred_element_type=jnp.float32)
    y = y + b_out.reshape(1, 1, dim).astype(jnp.float32)
    # to_out's Dropout(p=0.0) is the identity.
    return y.astype(out_dtype)


def attention_reference(x, w_qkv, w_out, b_out, *, heads, dim_head):
    """Pure-JAX f32 reference matching the PyTorch forward (mask=None)."""
    b, n, dim = x.shape
    inner = heads * dim_head
    scale = float(dim_head) ** -0.5
    qkv = jnp.einsum('bnd,de->bne', x, w_qkv)
    q, k, v = jnp.split(qkv, 3, axis=-1)

    def to_heads(t):
        return t.reshape(b, n, heads, dim_head).transpose(0, 2, 1, 3)

    q, k, v = map(to_heads, (q, k, v))
    dots = jnp.einsum('bhid,bhjd->bhij', q, k) * scale
    attn = jax.nn.softmax(dots, axis=-1)
    out = jnp.einsum('bhij,bhjd->bhid', attn, v)
    out = out.transpose(0, 2, 1, 3).reshape(b, n, inner)
    return jnp.einsum('bne,ed->bnd', out, w_out) + b_out.reshape(1, 1, dim)


if __name__ == "__main__":
    # Small shapes consistent with the module's forward: x is (b, n, dim).
    batch, seq, dim = 2, 8, 32
    heads, dim_head = 2, 16
    inner = heads * dim_head

    key = jax.random.PRNGKey(0)
    k_x, k_qkv, k_out, k_bout, k_x2 = jax.random.split(key, 5)

    x = jax.random.normal(k_x, (batch, seq, dim), dtype=jnp.float32)
    w_qkv = jax.random.normal(k_qkv, (dim, 3 * inner), dtype=jnp.float32) * 0.05
    w_out = jax.random.normal(k_out, (inner, dim), dtype=jnp.float32) * 0.05
    b_out = jax.random.normal(k_bout, (1, dim), dtype=jnp.float32) * 0.05

    y_ref = attention_reference(x, w_qkv, w_out, b_out,
                                heads=heads, dim_head=dim_head)

    # 1) f32 MXU operands, single q/kv tile -- tight tolerance.
    y32 = attention_forward(x, w_qkv, w_out, b_out, heads=heads,
                            dim_head=dim_head, compute_dtype=jnp.float32)
    y32 = jax.block_until_ready(y32)
    assert y32.shape == (batch, seq, dim)
    assert jnp.allclose(y32, y_ref, atol=2e-3, rtol=2e-3), "f32 path mismatch"

    # 2) bf16 MXU operands / f32 softmax+accumulate -- looser tolerance.
    ybf = attention_forward(x, w_qkv, w_out, b_out, heads=heads,
                            dim_head=dim_head, compute_dtype=jnp.bfloat16)
    ybf = jax.block_until_ready(ybf)
    assert ybf.shape == (batch, seq, dim)
    assert jnp.allclose(ybf.astype(jnp.float32), y_ref,
                        atol=5e-2, rtol=5e-2), "bf16 path mismatch"

    # 3) multi-tile flash path with kv padding + masking (seq=12, tiles=8 -> pad to 16).
    seq2 = 12
    x2 = jax.random.normal(k_x2, (batch, seq2, dim), dtype=jnp.float32)
    y2_ref = attention_reference(x2, w_qkv, w_out, b_out,
                                 heads=heads, dim_head=dim_head)
    y2 = attention_forward(x2, w_qkv, w_out, b_out, heads=heads,
                           dim_head=dim_head, compute_dtype=jnp.float32,
                           q_tile=8, kv_tile=8)
    y2 = jax.block_until_ready(y2)
    assert y2.shape == (batch, seq2, dim)
    assert jnp.allclose(y2, y2_ref, atol=2e-3, rtol=2e-3), "tiled path mismatch"

    # 4) decoupled q/kv tiles (q tile 8, kv tile 16).
    y3 = attention_forward(x2, w_qkv, w_out, b_out, heads=heads,
                           dim_head=dim_head, compute_dtype=jnp.float32,
                           q_tile=8, kv_tile=16)
    y3 = jax.block_until_ready(y3)
    assert jnp.allclose(y3, y2_ref, atol=2e-3, rtol=2e-3), "decoupled-tile mismatch"

    print("KERNEL_OK")
</pallas_src>

<mosaic_0001>
module attributes {stable_mosaic.version = 11 : i64} {
  func.func @_flash_attention_kernel(%arg0: i32, %arg1: i32, %arg2: i32, %arg3: i32, %arg4: memref<1x1x8x16xf32, #tpu.memory_space<vmem>>, %arg5: memref<1x1x8x16xf32, #tpu.memory_space<vmem>>, %arg6: memref<1x1x8x16xf32, #tpu.memory_space<vmem>>, %arg7: memref<1x1x8x16xf32, #tpu.memory_space<vmem>>, %arg8: memref<8x1xf32, #tpu.memory_space<vmem>>, %arg9: memref<8x1xf32, #tpu.memory_space<vmem>>, %arg10: memref<8x16xf32, #tpu.memory_space<vmem>>) attributes {dimension_semantics = [#tpu.dimension_semantics<parallel>, #tpu.dimension_semantics<parallel>, #tpu.dimension_semantics<parallel>, #tpu.dimension_semantics<arbitrary>], iteration_bounds = array<i64: 2, 2, 1, 1>, scalar_prefetch = 0 : i64, scratch_operands = 3 : i64, tpu.core_type = #tpu.core_type<tc>, window_params = [{transform_indices = @transform_0, window_bounds = array<i64: 1, 1, 8, 16>}, {transform_indices = @transform_1, window_bounds = array<i64: 1, 1, 8, 16>}, {transform_indices = @transform_2, window_bounds = array<i64: 1, 1, 8, 16>}, {transform_indices = @transform_3, window_bounds = array<i64: 1, 1, 8, 16>}]} {
    %c0_i32 = arith.constant 0 : i32
    %0 = arith.cmpi eq, %arg3, %c0_i32 : i32
    %1 = arith.extui %0 : i1 to i32
    %c0_i32_0 = arith.constant 0 : i32
    %2 = arith.cmpi ne, %1, %c0_i32_0 : i32
    scf.if %2 {
      %cst_29 = arith.constant 0xFF800000 : f32
      %35 = vector.broadcast %cst_29 : f32 to vector<8x1xf32>
      %c0_30 = arith.constant 0 : index
      %c0_31 = arith.constant 0 : index
      %36 = vector.load %arg8[%c0_30, %c0_31] : memref<8x1xf32, #tpu.memory_space<vmem>>, vector<8x1xf32>
      tpu.vector_store %arg8[%c0_30, %c0_31], %35 {strides = array<i32>} : memref<8x1xf32, #tpu.memory_space<vmem>>, vector<8x1xf32>,
      %cst_32 = arith.constant 0.000000e+00 : f32
      %37 = vector.broadcast %cst_32 : f32 to vector<8x1xf32>
      %c0_33 = arith.constant 0 : index
      %c0_34 = arith.constant 0 : index
      %38 = vector.load %arg9[%c0_33, %c0_34] : memref<8x1xf32, #tpu.memory_space<vmem>>, vector<8x1xf32>
      tpu.vector_store %arg9[%c0_33, %c0_34], %37 {strides = array<i32>} : memref<8x1xf32, #tpu.memory_space<vmem>>, vector<8x1xf32>,
      %cst_35 = arith.constant 0.000000e+00 : f32
      %39 = vector.broadcast %cst_35 : f32 to vector<8x16xf32>
      %c0_36 = arith.constant 0 : index
      %c0_37 = arith.constant 0 : index
      %40 = vector.load %arg10[%c0_36, %c0_37] : memref<8x16xf32, #tpu.memory_space<vmem>>, vector<8x16xf32>
      tpu.vector_store %arg10[%c0_36, %c0_37], %39 {strides = array<i32>} : memref<8x16xf32, #tpu.memory_space<vmem>>, vector<8x16xf32>,
    } else {
    }
    %c0 = arith.constant 0 : index
    %c0_1 = arith.constant 0 : index
    %c0_2 = arith.constant 0 : index
    %c0_3 = arith.constant 0 : index
    %3 = vector.load %arg4[%c0, %c0_1, %c0_2, %c0_3] : memref<1x1x8x16xf32, #tpu.memory_space<vmem>>, vector<1x1x8x16xf32>
    %4 = vector.shape_cast %3 : vector<1x1x8x16xf32> to vector<8x16xf32>
    %c0_4 = arith.constant 0 : index
    %c0_5 = arith.constant 0 : index
    %c0_6 = arith.constant 0 : index
    %c0_7 = arith.constant 0 : index
    %5 = vector.load %arg5[%c0_4, %c0_5, %c0_6, %c0_7] : memref<1x1x8x16xf32, #tpu.memory_space<vmem>>, vector<1x1x8x16xf32>
    %6 = vector.shape_cast %5 : vector<1x1x8x16xf32> to vector<8x16xf32>
    %c0_8 = arith.constant 0 : index
    %c0_9 = arith.constant 0 : index
    %c0_10 = arith.constant 0 : index
    %c0_11 = arith.constant 0 : index
    %7 = vector.load %arg6[%c0_8, %c0_9, %c0_10, %c0_11] : memref<1x1x8x16xf32, #tpu.memory_space<vmem>>, vector<1x1x8x16xf32>
    %8 = vector.shape_cast %7 : vector<1x1x8x16xf32> to vector<8x16xf32>
    %cst = arith.constant dense<0.000000e+00> : vector<8x8xf32>
    %9 = tpu.matmul %4, %6, %cst {dimension_numbers = #tpu.dot_dimension_numbers<[1], [1], [0], [0], [0, 0, 1, 0], [], []>} : vector<8x16xf32>, vector<8x16xf32>, vector<8x8xf32> -> vector<8x8xf32>
    %c0_12 = arith.constant 0 : index
    %c0_13 = arith.constant 0 : index
    %10 = vector.load %arg8[%c0_12, %c0_13] : memref<8x1xf32, #tpu.memory_space<vmem>>, vector<8x1xf32>
    %cst_14 = arith.constant dense<0xFF800000> : vector<8xf32>
    %11 = vector.multi_reduction <maximumf>, %9, %cst_14 [1] : vector<8x8xf32> to vector<8xf32>
    %12 = vector.shape_cast %11 : vector<8xf32> to vector<8x1xf32>
    %13 = arith.maximumf %10, %12 : vector<8x1xf32>
    %14 = arith.subf %10, %13 : vector<8x1xf32>
    %15 = math.exp %14 : vector<8x1xf32>
    %16 = vector.broadcast %13 : vector<8x1xf32> to vector<8x8xf32>
    %17 = arith.subf %9, %16 : vector<8x8xf32>
    %18 = math.exp %17 : vector<8x8xf32>
    %c0_15 = arith.constant 0 : index
    %c0_16 = arith.constant 0 : index
    %19 = vector.load %arg9[%c0_15, %c0_16] : memref<8x1xf32, #tpu.memory_space<vmem>>, vector<8x1xf32>
    %20 = arith.mulf %15, %19 : vector<8x1xf32>
    %cst_17 = arith.constant dense<0.000000e+00> : vector<8xf32>
    %21 = vector.multi_reduction <add>, %18, %cst_17 [1] : vector<8x8xf32> to vector<8xf32>
    %22 = vector.shape_cast %21 : vector<8xf32> to vector<8x1xf32>
    %23 = arith.addf %20, %22 : vector<8x1xf32>
    %c0_18 = arith.constant 0 : index
    %c0_19 = arith.constant 0 : index
    %24 = vector.load %arg9[%c0_18, %c0_19] : memref<8x1xf32, #tpu.memory_space<vmem>>, vector<8x1xf32>
    tpu.vector_store %arg9[%c0_18, %c0_19], %23 {strides = array<i32>} : memref<8x1xf32, #tpu.memory_space<vmem>>, vector<8x1xf32>,
    %c0_20 = arith.constant 0 : index
    %c0_21 = arith.constant 0 : index
    %25 = vector.load %arg10[%c0_20, %c0_21] : memref<8x16xf32, #tpu.memory_space<vmem>>, vector<8x16xf32>
    %26 = vector.broadcast %15 : vector<8x1xf32> to vector<8x16xf32>
    %27 = arith.mulf %26, %25 : vector<8x16xf32>
    %cst_22 = arith.constant dense<0.000000e+00> : vector<8x16xf32>
    %28 = tpu.matmul %18, %8, %cst_22 {dimension_numbers = #tpu.dot_dimension_numbers<[1], [0], [0], [1], [0, 0, 1, 1], [], []>} : vector<8x8xf32>, vector<8x16xf32>, vector<8x16xf32> -> vector<8x16xf32>
    %29 = arith.addf %27, %28 : vector<8x16xf32>
    %c0_23 = arith.constant 0 : index
    %c0_24 = arith.constant 0 : index
    %30 = vector.load %arg10[%c0_23, %c0_24] : memref<8x16xf32, #tpu.memory_space<vmem>>, vector<8x16xf32>
    tpu.vector_store %arg10[%c0_23, %c0_24], %29 {strides = array<i32>} : memref<8x16xf32, #tpu.memory_space<vmem>>, vector<8x16xf32>,
    %c0_25 = arith.constant 0 : index
    %c0_26 = arith.constant 0 : index
    %31 = vector.load %arg8[%c0_25, %c0_26] : memref<8x1xf32, #tpu.memory_space<vmem>>, vector<8x1xf32>
    tpu.vector_store %arg8[%c0_25, %c0_26], %13 {strides = array<i32>} : memref<8x1xf32, #tpu.memory_space<vmem>>, vector<8x1xf32>,
    %c0_i32_27 = arith.constant 0 : i32
    %32 = arith.cmpi eq, %arg3, %c0_i32_27 : i32
    %33 = arith.extui %32 : i1 to i32
    %c0_i32_28 = arith.constant 0 : i32
    %34 = arith.cmpi ne, %33, %c0_i32_28 : i32
    scf.if %34 {
      %c0_29 = arith.constant 0 : index
      %c0_30 = arith.constant 0 : index
      %35 = vector.load %arg9[%c0_29, %c0_30] : memref<8x1xf32, #tpu.memory_space<vmem>>, vector<8x1xf32>
      %36 = tpu.reciprocal %35 {approx = true} : vector<8x1xf32> -> vector<8x1xf32>
      %c0_31 = arith.constant 0 : index
      %c0_32 = arith.constant 0 : index
      %37 = vector.load %arg10[%c0_31, %c0_32] : memref<8x16xf32, #tpu.memory_space<vmem>>, vector<8x16xf32>
      %38 = vector.broadcast %36 : vector<8x1xf32> to vector<8x16xf32>
      %39 = arith.mulf %37, %38 : vector<8x16xf32>
      %c0_33 = arith.constant 0 : index
      %c0_34 = arith.constant 0 : index
      %c0_35 = arith.constant 0 : index
      %c0_36 = arith.constant 0 : index
      %40 = vector.load %arg7[%c0_33, %c0_34, %c0_35, %c0_36] : memref<1x1x8x16xf32, #tpu.memory_space<vmem>>, vector<1x1x8x16xf32>
      %41 = vector.shape_cast %40 : vector<1x1x8x16xf32> to vector<8x16xf32>
      %42 = vector.shape_cast %39 : vector<8x16xf32> to vector<1x1x8x16xf32>
      tpu.vector_store %arg7[%c0_33, %c0_34, %c0_35, %c0_36], %42 {strides = array<i32>} : memref<1x1x8x16xf32, #tpu.memory_space<vmem>>, vector<1x1x8x16xf32>,
    } else {
    }
    return
  }
  func.func @transform_0(%arg0: i32, %arg1: i32, %arg2: i32, %arg3: i32) -> (i32, i32, i32, i32) {
    %c0_i32 = arith.constant 0 : i32
    %c0_i32_0 = arith.constant 0 : i32
    return %arg0, %arg1, %arg2, %c0_i32 : i32, i32, i32, i32
  }
  func.func @transform_1(%arg0: i32, %arg1: i32, %arg2: i32, %arg3: i32) -> (i32, i32, i32, i32) {
    %c0_i32 = arith.constant 0 : i32
    %c0_i32_0 = arith.constant 0 : i32
    return %arg0, %arg1, %arg3, %c0_i32 : i32, i32, i32, i32
  }
  func.func @transform_2(%arg0: i32, %arg1: i32, %arg2: i32, %arg3: i32) -> (i32, i32, i32, i32) {
    %c0_i32 = arith.constant 0 : i32
    %c0_i32_0 = arith.constant 0 : i32
    return %arg0, %arg1, %arg3, %c0_i32 : i32, i32, i32, i32
  }
  func.func @transform_3(%arg0: i32, %arg1: i32, %arg2: i32, %arg3: i32) -> (i32, i32, i32, i32) {
    %c0_i32 = arith.constant 0 : i32
    %c0_i32_0 = arith.constant 0 : i32
    return %arg0, %arg1, %arg2, %c0_i32 : i32, i32, i32, i32
  }
}

</mosaic_0001>

<llo_original>
// kernel: tpu_custom_call.1
$region0: #{tpu_custom_call.1}
  #allocation0 [shape = 'u32[]', space=smem, size = 0x4, offset = 0x4, fixed_abs, tag = 'smem constant byte address 0x4 - core index']
  #allocation1 [shape = 'u32[144,128]{1,0:T(1,128)}', space=vmem, size = 0x12000, scoped, tag = 'internal scratch']
  #allocation2 [shape = 'f32[8,1]{1,0:T(8,128)}', space=vmem, size = 0x1000, scoped, tag = 'scratch operand']
  #allocation3 [shape = 'f32[8,1]{1,0:T(8,128)}', space=vmem, size = 0x1000, scoped, tag = 'scratch operand']
  #allocation4 [shape = 'f32[8,16]{1,0:T(8,128)}', space=vmem, size = 0x1000, scoped, tag = 'scratch operand']
  %s0 = inlined_call_operand.hbm [shape: f32[2,2,8,16], index: 0, kind: input, shape index: {}]
  %s1 = inlined_call_operand.hbm [shape: f32[2,2,8,16], index: 1, kind: input, shape index: {}]
  %s2 = inlined_call_operand.hbm [shape: f32[2,2,8,16], index: 2, kind: input, shape index: {}]
  %s3 = inlined_call_operand.hbm [shape: f32[2,2,8,16], index: 3, kind: output, shape index: {}]
  %s4 = sld [smem:[#allocation0]]
  $region65: #{tpu_custom_call.1} parent=0
    _
  %s6 = ssub.s32 1, %s4
  %s7 = scalar_select 0, %s6, %s4
  $region1: #{tpu_custom_call.1} parent=0
    #allocation5 [shape = 'u8[8192]{0}', space=vmem, size = 0x2000, scoped, tag = 'input window, operand 0']
    #allocation6 [shape = 's32[2]{0}', space=sflag, size = 0x8, scoped, tag = 'scoped memory for tpu_custom_call.1']
    #allocation7 [shape = 's32[2]{0}', space=sflag, size = 0x8, scoped, tag = 'scoped memory for tpu_custom_call.1']
    #allocation8 [shape = 'u8[8192]{0}', space=vmem, size = 0x2000, scoped, tag = 'input window, operand 1']
    #allocation9 [shape = 's32[2]{0}', space=sflag, size = 0x8, scoped, tag = 'scoped memory for tpu_custom_call.1']
    #allocation10 [shape = 'u8[8192]{0}', space=vmem, size = 0x2000, scoped, tag = 'input window, operand 2']
    #allocation11 [shape = 'u8[8192]{0}', space=vmem, size = 0x2000, scoped, tag = 'output window, operand 0']
    %8 = vsyncpa [#allocation6], 0
    %s9 = scalar_lea.sflag [#allocation6], 1
    %10 = vsyncpa %s9, 0
    %11 = vsyncpa [#allocation9], 0
    %s12 = scalar_lea.sflag [#allocation9], 1
    %13 = vsyncpa %s12, 0
    %14 = vsyncpa [#allocation7], 0
    %s15 = scalar_lea.sflag [#allocation7], 1
    %16 = vsyncpa %s15, 0
    loop: start=0, step=1, limit=6
    $region2: #{tpu_custom_call.1} parent=1 // loop_pre_header
      _
    $region3: #{tpu_custom_call.1} parent=1 // loop_header
      %s18 = sphi 0, %s22
      %p19 = scmp.ge.s32.totalorder %s18, 6
      %s25 = sphi 0, %s51
      %s26 = sphi 0, %s47
      %s27 = sphi 0, %s43
      %s28 = sphi 0, %s39
      %s29 = sphi 0, %s25
      %s30 = sphi 0, %s26
      %s31 = sphi 0, %s27
      %s32 = sphi 0, %s28
      %s33 = sphi 0, %s29
      %s34 = sphi 0, %s30
      %s35 = sphi 0, %s31
      %s36 = sphi 0, %s32
      %s58 = sphi 0, %s60
      %s61 = sphi 0, %s58
      %s62 = sphi 0, %s61
      %s78 = sphi 0, %s62
      %s88 = sphi 0, %s90
      %s91 = sphi 0, %s88
      %s92 = sphi 0, %s91
      %s108 = sphi 0, %s92
      %s118 = sphi 0, %s120
      %s121 = sphi 0, %s118
      %s122 = sphi 0, %s121
      %s138 = sphi 0, %s122
      %s148 = sphi 0, %s150
      %s151 = sphi 0, %s148
      %s152 = sphi 0, %s151
      %s168 = sphi 0, %s152
    $region4: #{tpu_custom_call.1} parent=1 // loop_header_branch
      %21 = sbr.rel (%p19) target = $region8
    $region5: #{tpu_custom_call.1} parent=1 // loop_body
      %s23 = ssub.s32 %s18, 1
      %s24 = ssub.s32 %s18, 2
      %s37 = sadd.s32 1, %s28
      %p38 = scmp.ge.s32.totalorder %s37, 1
      %s39 = scalar_select %p38, 0, %s37
      %s40 = sadd.s32 1, %s27
      %s41 = scalar_select %p38, %s40, %s27
      %p42 = scmp.ge.s32.totalorder %s41, 1
      %s43 = scalar_select %p42, 0, %s41
      %s44 = sadd.s32 1, %s26
      %s45 = scalar_select %p42, %s44, %s26
      %p46 = scmp.ge.s32.totalorder %s45, 2
      %s47 = scalar_select %p46, 0, %s45
      %s48 = sadd.s32 1, %s25
      %s49 = scalar_select %p46, %s48, %s25
      %p50 = scmp.ge.s32.totalorder %s49, 2
      %s51 = scalar_select %p50, 0, %s49
      %s52 = ssub.s32 %s25, %s51
      %s53 = ssub.s32 %s26, %s47
      %s54 = sor.u32 %s52, %s53
      %s55 = ssub.s32 %s27, %s43
      %s56 = sor.u32 %s54, %s55
      %p57 = scmp.eq.s32.totalorder %s56, 0
      %s59 = sadd.s32 %s58, 1
      %s60 = scalar_select %p57, %s58, %s59
      %p63 = pneg %p57
      %p64 = scmp.eq.s32.totalorder %s18, 3
      %p65 = por %p63, %p64
      %p66 = scmp.ne.s32.totalorder %s58, %s61
      %p67 = scmp.eq.s32.totalorder %s18, 0
      %p68 = por %p66, %p67
      %p69 = scmp.ne.s32.totalorder %s58, %s61
      %p70 = scmp.eq.s32.totalorder %s23, 3
      %p71 = por %p69, %p70
      %p72 = scmp.ne.s32.totalorder %s61, %s62
      %p73 = scmp.eq.s32.totalorder %s23, 0
      %p74 = por %p72, %p73
      %p75 = scmp.ne.s32.totalorder %s61, %s62
      %p76 = scmp.eq.s32.totalorder %s24, 3
      %p77 = por %p75, %p76
      %p79 = scmp.ne.s32.totalorder %s62, %s78
      %p80 = scmp.eq.s32.totalorder %s24, 0
      %p81 = por %p79, %p80
      %s82 = ssub.s32 %s25, %s51
      %s83 = ssub.s32 %s26, %s47
      %s84 = sor.u32 %s82, %s83
      %s85 = ssub.s32 %s28, %s39
      %s86 = sor.u32 %s84, %s85
      %p87 = scmp.eq.s32.totalorder %s86, 0
      %s89 = sadd.s32 %s88, 1
      %s90 = scalar_select %p87, %s88, %s89
      %p93 = pneg %p87
      %p94 = scmp.eq.s32.totalorder %s18, 3
      %p95 = por %p93, %p94
      %p96 = scmp.ne.s32.totalorder %s88, %s91
      %p97 = scmp.eq.s32.totalorder %s18, 0
      %p98 = por %p96, %p97
      %p99 = scmp.ne.s32.totalorder %s88, %s91
      %p100 = scmp.eq.s32.totalorder %s23, 3
      %p101 = por %p99, %p100
      %p102 = scmp.ne.s32.totalorder %s91, %s92
      %p103 = scmp.eq.s32.totalorder %s23, 0
      %p104 = por %p102, %p103
      %p105 = scmp.ne.s32.totalorder %s91, %s92
      %p106 = scmp.eq.s32.totalorder %s24, 3
      %p107 = por %p105, %p106
      %p109 = scmp.ne.s32.totalorder %s92, %s108
      %p110 = scmp.eq.s32.totalorder %s24, 0
      %p111 = por %p109, %p110
      %s112 = ssub.s32 %s25, %s51
      %s113 = ssub.s32 %s26, %s47
      %s114 = sor.u32 %s112, %s113
      %s115 = ssub.s32 %s28, %s39
      %s116 = sor.u32 %s114, %s115
      %p117 = scmp.eq.s32.totalorder %s116, 0
      %s119 = sadd.s32 %s118, 1
      %s120 = scalar_select %p117, %s118, %s119
      %p123 = pneg %p117
      %p124 = scmp.eq.s32.totalorder %s18, 3
      %p125 = por %p123, %p124
      %p126 = scmp.ne.s32.totalorder %s118, %s121
      %p127 = scmp.eq.s32.totalorder %s18, 0
      %p128 = por %p126, %p127
      %p129 = scmp.ne.s32.totalorder %s118, %s121
      %p130 = scmp.eq.s32.totalorder %s23, 3
      %p131 = por %p129, %p130
      %p132 = scmp.ne.s32.totalorder %s121, %s122
      %p133 = scmp.eq.s32.totalorder %s23, 0
      %p134 = por %p132, %p133
      %p135 = scmp.ne.s32.totalorder %s121, %s122
      %p136 = scmp.eq.s32.totalorder %s24, 3
      %p137 = por %p135, %p136
      %p139 = scmp.ne.s32.totalorder %s122, %s138
      %p140 = scmp.eq.s32.totalorder %s24, 0
      %p141 = por %p139, %p140
      %s142 = ssub.s32 %s25, %s51
      %s143 = ssub.s32 %s26, %s47
      %s144 = sor.u32 %s142, %s143
      %s145 = ssub.s32 %s27, %s43
      %s146 = sor.u32 %s144, %s145
      %p147 = scmp.eq.s32.totalorder %s146, 0
      %s149 = sadd.s32 %s148, 1
      %s150 = scalar_select %p147, %s148, %s149
      %p153 = pneg %p147
      %p154 = scmp.eq.s32.totalorder %s18, 3
      %p155 = por %p153, %p154
      %p156 = scmp.ne.s32.totalorder %s148, %s151
      %p157 = scmp.eq.s32.totalorder %s18, 0
      %p158 = por %p156, %p157
      %p159 = scmp.ne.s32.totalorder %s148, %s151
      %p160 = scmp.eq.s32.totalorder %s23, 3
      %p161 = por %p159, %p160
      %p162 = scmp.ne.s32.totalorder %s151, %s152
      %p163 = scmp.eq.s32.totalorder %s23, 0
      %p164 = por %p162, %p163
      %p165 = scmp.ne.s32.totalorder %s151, %s152
      %p166 = scmp.eq.s32.totalorder %s24, 3
      %p167 = por %p165, %p166
      %p169 = scmp.ne.s32.totalorder %s152, %s168
      %p170 = scmp.eq.s32.totalorder %s24, 0
      %p171 = por %p169, %p170
      %p172 = scmp.le.s32.totalorder 1, %s18
      %p173 = scmp.lt.s32.totalorder %s18, 5
      %p174 = pnand %p172, %p173
      %p175 = pneg %p174
      // Predicated region
      $region9: #{tpu_custom_call.1} parent=5 // pred_check
        _
      $region10: #{tpu_custom_call.1} parent=5 // pred_check_branch
        %177 = sbr.rel (%p174) target = $region12
      $region11: #{tpu_custom_call.1} parent=5 // pred_region
        %s178 = ssub.s32 %s18, 1
      $region12: #{tpu_custom_call.1} parent=5 // pred_fallthru
        _
      %p179 = scmp.lt.s32.totalorder %s18, 4
      // Predicated region
      $region13: #{tpu_custom_call.1} parent=5 // pred_check
        %p180 = pneg %p179
      $region14: #{tpu_custom_call.1} parent=5 // pred_check_branch
        %182 = sbr.rel (%p180) target = $region16
      $region15: #{tpu_custom_call.1} parent=5 // pred_region
        // Predicated region
        $region17: #{tpu_custom_call.1} parent=15 // pred_check
          %p183 = pneg %p68
        $region18: #{tpu_custom_call.1} parent=15 // pred_check_branch
          %185 = sbr.rel (%p183) target = $region20
        $region19: #{tpu_custom_call.1} parent=15 // pred_region
          %s186 = sand.u32 %s58, 1
          %s187 = scalar_lea.sflag [#allocation6], %s186
          %s188 = sand.u32 %s58, 1
          %s189 = smul.addr %s188, 8
          %s190 = scalar_lea.vmem [#allocation5], %s189
          %s192 = ssub.s32 128, 128
          %193 = vsyncadd %s187, %s192
          %s194 = sadd.s32 %s27, %s26
          %s195 = smul.addr %s25, 2
          %s196 = sadd.s32 %s194, %s195
          %s197 = smul.addr %s196, 128
          %s198 = scalar_lea.hbm %s0, %s197
          %s200 = sshll.u32 %s190, 4
          %s201 = int_to_ptr.vmem [resolvable:$true] %s200
          %203 = dma.hbm_to_vmem [thread:$0]  %s198, 128, %s201, %s187
        $region20: #{tpu_custom_call.1} parent=15 // pred_fallthru
          _
        // Predicated region
        $region21: #{tpu_custom_call.1} parent=15 // pred_check
          %p204 = pneg %p98
        $region22: #{tpu_custom_call.1} parent=15 // pred_check_branch
          %206 = sbr.rel (%p204) target = $region24
        $region23: #{tpu_custom_call.1} parent=15 // pred_region
          %s207 = sand.u32 %s18, 1
          %s208 = scalar_lea.sflag [#allocation9], %s207
          %s209 = sand.u32 %s88, 1
          %s210 = smul.addr %s209, 8
          %s211 = scalar_lea.vmem [#allocation8], %s210
          %s213 = ssub.s32 128, 128
          %214 = vsyncadd %s208, %s213
          %s215 = sadd.s32 %s28, %s26
          %s216 = smul.addr %s25, 2
          %s217 = sadd.s32 %s215, %s216
          %s218 = smul.addr %s217, 128
          %s219 = scalar_lea.hbm %s1, %s218
          %s221 = sshll.u32 %s211, 4
          %s222 = int_to_ptr.vmem [resolvable:$true] %s221
          %224 = dma.hbm_to_vmem [thread:$0]  %s219, 128, %s222, %s208
        $region24: #{tpu_custom_call.1} parent=15 // pred_fallthru
          _
        // Predicated region
        $region25: #{tpu_custom_call.1} parent=15 // pred_check
          %p225 = pneg %p128
        $region26: #{tpu_custom_call.1} parent=15 // pred_check_branch
          %227 = sbr.rel (%p225) target = $region28
        $region27: #{tpu_custom_call.1} parent=15 // pred_region
          %s228 = sand.u32 %s18, 1
          %s229 = scalar_lea.sflag [#allocation9], %s228
          %s230 = sand.u32 %s118, 1
          %s231 = smul.addr %s230, 8
          %s232 = scalar_lea.vmem [#allocation10], %s231
          %s234 = ssub.s32 128, 128
          %235 = vsyncadd %s229, %s234
          %s236 = sadd.s32 %s28, %s26
          %s237 = smul.addr %s25, 2
          %s238 = sadd.s32 %s236, %s237
          %s239 = smul.addr %s238, 128
          %s240 = scalar_lea.hbm %s2, %s239
          %s242 = sshll.u32 %s232, 4
          %s243 = int_to_ptr.vmem [resolvable:$true] %s242
          %245 = dma.hbm_to_vmem [thread:$0]  %s240, 128, %s243, %s229
        $region28: #{tpu_custom_call.1} parent=15 // pred_fallthru
          _
      $region16: #{tpu_custom_call.1} parent=5 // pred_fallthru
        _
      %p246 = scmp.le.s32.totalorder 1, %s18
      %p247 = scmp.lt.s32.totalorder %s18, 5
      %p248 = pnand %p246, %p247
      %p249 = pneg %p248
      // Predicated region
      $region29: #{tpu_custom_call.1} parent=5 // pred_check
        _
      $region30: #{tpu_custom_call.1} parent=5 // pred_check_branch
        %251 = sbr.rel (%p248) target = $region32
      $region31: #{tpu_custom_call.1} parent=5 // pred_region
        %s252 = ssub.s32 %s18, 1
        %s253 = sand.u32 %s61, 1
        %s254 = scalar_lea.sflag [#allocation6], %s253
        %s255 = sand.u32 %s61, 1
        %s256 = smul.addr %s255, 8
        %s257 = scalar_lea.vmem [#allocation5], %s256
        // Predicated region
        $region33: #{tpu_custom_call.1} parent=31 // pred_check
          %p258 = pneg %p74
        $region34: #{tpu_custom_call.1} parent=31 // pred_check_branch
          %260 = sbr.rel (%p258) target = $region36
        $region35: #{tpu_custom_call.1} parent=31 // pred_region
          %261 = dma.done %s254, 128
        $region36: #{tpu_custom_call.1} parent=31 // pred_fallthru
          _
        %s262 = sand.u32 %s23, 1
        %s263 = scalar_lea.sflag [#allocation9], %s262
        %s264 = sand.u32 %s91, 1
        %s265 = smul.addr %s264, 8
        %s266 = scalar_lea.vmem [#allocation8], %s265
        // Predicated region
        $region37: #{tpu_custom_call.1} parent=31 // pred_check
          %p267 = pneg %p104
        $region38: #{tpu_custom_call.1} parent=31 // pred_check_branch
          %269 = sbr.rel (%p267) target = $region40
        $region39: #{tpu_custom_call.1} parent=31 // pred_region
          %270 = dma.done %s263, 128
        $region40: #{tpu_custom_call.1} parent=31 // pred_fallthru
          _
        %s271 = sand.u32 %s23, 1
        %s272 = scalar_lea.sflag [#allocation9], %s271
        %s273 = sand.u32 %s121, 1
        %s274 = smul.addr %s273, 8
        %s275 = scalar_lea.vmem [#allocation10], %s274
        // Predicated region
        $region41: #{tpu_custom_call.1} parent=31 // pred_check
          %p276 = pneg %p134
        $region42: #{tpu_custom_call.1} parent=31 // pred_check_branch
          %278 = sbr.rel (%p276) target = $region44
        $region43: #{tpu_custom_call.1} parent=31 // pred_region
          %279 = dma.done %s272, 128
        $region44: #{tpu_custom_call.1} parent=31 // pred_fallthru
          _
        %s280 = sand.u32 %s61, 1
        %s281 = scalar_lea.sflag [#allocation6], %s280
        %s282 = sand.u32 %s61, 1
        %s283 = smul.addr %s282, 8
        %s284 = scalar_lea.vmem [#allocation5], %s283
        %p285 = pneg %p74
        %p286 = pneg %p71
        %s287 = sand.u32 %s23, 1
        %s288 = scalar_lea.sflag [#allocation9], %s287
        %s289 = sand.u32 %s91, 1
        %s290 = smul.addr %s289, 8
        %s291 = scalar_lea.vmem [#allocation8], %s290
        %p292 = pneg %p104
        %p293 = pneg %p101
        %s294 = sand.u32 %s23, 1
        %s295 = scalar_lea.sflag [#allocation9], %s294
        %s296 = sand.u32 %s121, 1
        %s297 = smul.addr %s296, 8
        %s298 = scalar_lea.vmem [#allocation10], %s297
        %p299 = pneg %p134
        %p300 = pneg %p131
        %p301 = pneg %p164
        %p302 = pneg %p161
        %s303 = sand.u32 %s151, 1
        %s304 = scalar_lea.sflag [#allocation7], %s303
        %s305 = sand.u32 %s151, 1
        %s306 = smul.addr %s305, 8
        %s307 = scalar_lea.vmem [#allocation11], %s306
        %p308 = scmp.eq.s32.totalorder %s32, 0
        // Predicated region
        $region45: #{tpu_custom_call.1} parent=31 // pred_check
          %p309 = pneg %p308
        $region46: #{tpu_custom_call.1} parent=31 // pred_check_branch
          %311 = sbr.rel (%p309) target = $region48
        $region47: #{tpu_custom_call.1} parent=31 // pred_region
          %vm312 = vcmask 7168
          %313 = vst.msk [vmem:[#allocation2] sm:$0xff] %vm312, -inf
          %314 = vst.msk [vmem:[#allocation3] sm:$0xff] %vm312, 0.0
          %vm315 = vcmask 130048
          %316 = vst.msk [vmem:[#allocation4] sm:$0xff] %vm315, 0.0
        $region48: #{tpu_custom_call.1} parent=31 // pred_fallthru
          _
        %v317 = vld [vmem:[%s257] sm:$0xff]
        %v318 = vld [vmem:[%s266] sm:$0xff]
        %v319 = vld [vmem:[%s275] sm:$0xff]
        %vm320 = vcmask 130048
        %v322 = vsel %vm320, %v317, 0
        %v325 = vsel %vm320, %v318, 0
        %327 = vmatprep.subr.mxu0 0.0
        %328 = vmatpush1.xpose.msra.mxu0 0.0
        %329 = vmatprep.subr.mxu0 0.0
        %330 = vmatpush1.xpose.msra.mxu0 0.0
        %331 = vmatprep.subr.mxu0 0.0
        %332 = vmatpush1.xpose.msra.mxu0 0.0
        %333 = vmatprep.subr.mxu0 0.0
        %334 = vmatpush1.xpose.msra.mxu0 0.0
        %335 = vmatprep.subr.mxu0 0.0
        %336 = vmatpush1.xpose.msra.mxu0 0.0
        %337 = vmatprep.subr.mxu0 0.0
        %338 = vmatpush1.xpose.msra.mxu0 0.0
        %339 = vmatprep.subr.mxu0 0.0
        %340 = vmatpush1.xpose.msra.mxu0 0.0
        %341 = vmatprep.subr.mxu0 0.0
        %342 = vmatpush1.xpose.msra.mxu0 0.0
        %343 = vmatprep.subr.mxu0 0.0
        %344 = vmatpush1.xpose.msra.mxu0 0.0
        %345 = vmatprep.subr.mxu0 0.0
        %346 = vmatpush1.xpose.msra.mxu0 0.0
        %347 = vmatprep.subr.mxu0 0.0
        %348 = vmatpush1.xpose.msra.mxu0 0.0
        %349 = vmatprep.subr.mxu0 0.0
        %350 = vmatpush1.xpose.msra.mxu0 0.0
        %351 = vmatprep.subr.mxu0 0.0
        %352 = vmatpush1.xpose.msra.mxu0 0.0
        %353 = vmatprep.subr.mxu0 0.0
        %354 = vmatpush1.xpose.msra.mxu0 0.0
        %355 = vmatprep.subr.mxu0 0.0
        %356 = vmatpush1.xpose.msra.mxu0 0.0
        %357 = vmatprep.subr.mxu0 0.0
        %358 = vmatpush1.xpose.msra.mxu0 %v325
        %359 = vmatprep.subr.mxu0 0.0
        %360 = vmatpush2.xpose.msra.mxu0 0.0
        %361 = vmatprep.subr.mxu0 0.0
        %362 = vmatpush2.xpose.msra.mxu0 0.0
        %363 = vmatprep.subr.mxu0 0.0
        %364 = vmatpush2.xpose.msra.mxu0 0.0
        %365 = vmatprep.subr.mxu0 0.0
        %366 = vmatpush2.xpose.msra.mxu0 0.0
        %367 = vmatprep.subr.mxu0 0.0
        %368 = vmatpush2.xpose.msra.mxu0 0.0
        %369 = vmatprep.subr.mxu0 0.0
        %370 = vmatpush2.xpose.msra.mxu0 0.0
        %371 = vmatprep.subr.mxu0 0.0
        %372 = vmatpush2.xpose.msra.mxu0 0.0
        %373 = vmatprep.subr.mxu0 0.0
        %374 = vmatpush2.xpose.msra.mxu0 0.0
        %375 = vmatprep.subr.mxu0 0.0
        %376 = vmatpush2.xpose.msra.mxu0 0.0
        %377 = vmatprep.subr.mxu0 0.0
        %378 = vmatpush2.xpose.msra.mxu0 0.0
        %379 = vmatprep.subr.mxu0 0.0
        %380 = vmatpush2.xpose.msra.mxu0 0.0
        %381 = vmatprep.subr.mxu0 0.0
        %382 = vmatpush2.xpose.msra.mxu0 0.0
        %383 = vmatprep.subr.mxu0 0.0
        %384 = vmatpush2.xpose.msra.mxu0 0.0
        %385 = vmatprep.subr.mxu0 0.0
        %386 = vmatpush2.xpose.msra.mxu0 0.0
        %387 = vmatprep.subr.mxu0 0.0
        %388 = vmatpush2.xpose.msra.mxu0 0.0
        %389 = vmatprep.subr.mxu0 0.0
        %390 = vmatpush2.xpose.msra.mxu0 0.0
        %391 = vmatprep.mubr.f32.mxu0 0.0
        %392 = vmatmul.mubr.f32.gmra.mxu0 %v322
        %v393 = vpop.f32.mrf.mxu0
        %v394 = vadd.f32 0.0, %v393
        %v395 = vpop.f32.mrf.mxu0
        %396 = vdwg.mxu0
        %v397 = vld [vmem:[#allocation2] sm:$0xff]
        %vm398 = vcmask 64512
        %v399 = vsel %vm398, %v394, -inf
        %400 = vmax.xlane.f32.xlu0 %v399
        %v401 = vpop.xlane.xlu0 %400
        %v402 = vmax.f32 %v397, %v401
        %v403 = vsub.f32 %v397, %v402
        %v404 = vmul.f32 %v403, 1.442695
        %v405 = vpow.pop %v404
        %407 = vset.pattern.permute.xlu0 0
        %408 = vperm.xlu0 %407, %v402
        %v409 = vpop.permute.xlu0 %408
        %v411 = vsub.f32 %v394, %v409
        %v412 = vmul.f32 %v411, 1.442695
        %v413 = vpow.pop %v412
        %v414 = vld [vmem:[#allocation3] sm:$0xff]
        %v415 = vmul.f32 %v405, %v414
        %v416 = vsel %vm398, %v413, 0.0
        %417 = vadd.xlane.f32.xlu0 %v416
        %v418 = vpop.xlane.xlu0 %417
        %v419 = vadd.f32 %v415, %v418
        %vm420 = vcmask 7168
        %421 = vst.msk [vmem:[#allocation3] sm:$0xff] %vm420, %v419
        %v422 = vld [vmem:[#allocation4] sm:$0xff]
        %424 = vset.pattern.permute.xlu0 0
        %425 = vperm.xlu0 %424, %v405
        %v426 = vpop.permute.xlu0 %425
        %v428 = vmul.f32 %v426, %v422
        %v430 = vsel %vm398, %v413, 0
        %432 = vmatprep.subr.mxu0 0.0
        %433 = vmatpush1.msra.mxu0 0.0
        %434 = vmatprep.subr.mxu0 0.0
        %435 = vmatpush1.msra.mxu0 0.0
        %436 = vmatprep.subr.mxu0 0.0
        %437 = vmatpush1.msra.mxu0 0.0
        %438 = vmatprep.subr.mxu0 0.0
        %439 = vmatpush1.msra.mxu0 0.0
        %440 = vmatprep.subr.mxu0 0.0
        %441 = vmatpush1.msra.mxu0 0.0
        %442 = vmatprep.subr.mxu0 0.0
        %443 = vmatpush1.msra.mxu0 0.0
        %444 = vmatprep.subr.mxu0 0.0
        %445 = vmatpush1.msra.mxu0 0.0
        %446 = vmatprep.subr.mxu0 0.0
        %447 = vmatpush1.msra.mxu0 0.0
        %448 = vmatprep.subr.mxu0 0.0
        %449 = vmatpush1.msra.mxu0 0.0
        %450 = vmatprep.subr.mxu0 0.0
        %451 = vmatpush1.msra.mxu0 0.0
        %452 = vmatprep.subr.mxu0 0.0
        %453 = vmatpush1.msra.mxu0 0.0
        %454 = vmatprep.subr.mxu0 0.0
        %455 = vmatpush1.msra.mxu0 0.0
        %456 = vmatprep.subr.mxu0 0.0
        %457 = vmatpush1.msra.mxu0 0.0
        %458 = vmatprep.subr.mxu0 0.0
        %459 = vmatpush1.msra.mxu0 0.0
        %460 = vmatprep.subr.mxu0 0.0
        %461 = vmatpush1.msra.mxu0 0.0
        %462 = vmatprep.subr.mxu0 0.0
        %463 = vmatpush1.msra.mxu0 %v319
        %464 = vmatprep.subr.mxu0 0.0
        %465 = vmatpush2.msra.mxu0 0.0
        %466 = vmatprep.subr.mxu0 0.0
        %467 = vmatpush2.msra.mxu0 0.0
        %468 = vmatprep.subr.mxu0 0.0
        %469 = vmatpush2.msra.mxu0 0.0
        %470 = vmatprep.subr.mxu0 0.0
        %471 = vmatpush2.msra.mxu0 0.0
        %472 = vmatprep.subr.mxu0 0.0
        %473 = vmatpush2.msra.mxu0 0.0
        %474 = vmatprep.subr.mxu0 0.0
        %475 = vmatpush2.msra.mxu0 0.0
        %476 = vmatprep.subr.mxu0 0.0
        %477 = vmatpush2.msra.mxu0 0.0
        %478 = vmatprep.subr.mxu0 0.0
        %479 = vmatpush2.msra.mxu0 0.0
        %480 = vmatprep.subr.mxu0 0.0
        %481 = vmatpush2.msra.mxu0 0.0
        %482 = vmatprep.subr.mxu0 0.0
        %483 = vmatpush2.msra.mxu0 0.0
        %484 = vmatprep.subr.mxu0 0.0
        %485 = vmatpush2.msra.mxu0 0.0
        %486 = vmatprep.subr.mxu0 0.0
        %487 = vmatpush2.msra.mxu0 0.0
        %488 = vmatprep.subr.mxu0 0.0
        %489 = vmatpush2.msra.mxu0 0.0
        %490 = vmatprep.subr.mxu0 0.0
        %491 = vmatpush2.msra.mxu0 0.0
        %492 = vmatprep.subr.mxu0 0.0
        %493 = vmatpush2.msra.mxu0 0.0
        %494 = vmatprep.subr.mxu0 0.0
        %495 = vmatpush2.msra.mxu0 0.0
        %496 = vmatprep.mubr.f32.mxu0 0.0
        %497 = vmatmul.mubr.f32.gmra.mxu0 %v430
        %v498 = vpop.f32.mrf.mxu0
        %v499 = vadd.f32 0.0, %v498
        %v500 = vpop.f32.mrf.mxu0
        %501 = vdwg.mxu0
        %v502 = vadd.f32 %v428, %v499
        %503 = vst.msk [vmem:[#allocation4] sm:$0xff] %vm320, %v502
        %504 = vst.msk [vmem:[#allocation2] sm:$0xff] %vm420, %v402
        // Predicated region
        $region49: #{tpu_custom_call.1} parent=31 // pred_check
          %p505 = pneg %p308
        $region50: #{tpu_custom_call.1} parent=31 // pred_check_branch
          %507 = sbr.rel (%p505) target = $region52
        $region51: #{tpu_custom_call.1} parent=31 // pred_region
          %v508 = vld [vmem:[#allocation3] sm:$0xff]
          %v509 = vrcp.pop %v508
          %v510 = vld [vmem:[#allocation4] sm:$0xff]
          %512 = vset.pattern.permute.xlu0 0
          %513 = vperm.xlu0 %512, %v509
          %v514 = vpop.permute.xlu0 %513
          %v516 = vmul.f32 %v510, %v514
          %517 = vst.msk [vmem:[%s307] sm:$0xff] %vm320, %v516
        $region52: #{tpu_custom_call.1} parent=31 // pred_fallthru
          _
        %s518 = sand.u32 %s151, 1
        %s519 = scalar_lea.sflag [#allocation7], %s518
        %s520 = sand.u32 %s151, 1
        %s521 = smul.addr %s520, 8
        %s522 = scalar_lea.vmem [#allocation11], %s521
        // Predicated region
        $region53: #{tpu_custom_call.1} parent=31 // pred_check
          %p523 = pneg %p161
        $region54: #{tpu_custom_call.1} parent=31 // pred_check_branch
          %525 = sbr.rel (%p523) target = $region56
        $region55: #{tpu_custom_call.1} parent=31 // pred_region
          %s527 = ssub.s32 128, 128
          %528 = vsyncadd %s519, %s527
          %s529 = sadd.s32 %s31, %s30
          %s530 = smul.addr %s29, 2
          %s531 = sadd.s32 %s529, %s530
          %s532 = smul.addr %s531, 128
          %s533 = scalar_lea.hbm %s3, %s532
          %s535 = sshll.u32 %s522, 4
          %s536 = int_to_ptr.vmem [resolvable:$true] %s535
          %538 = dma.vmem_to_hbm [thread:$0]  %s536, 128, %s533, %s519
        $region56: #{tpu_custom_call.1} parent=31 // pred_fallthru
          _
      $region32: #{tpu_custom_call.1} parent=5 // pred_fallthru
        _
      %p539 = scmp.le.s32.totalorder 2, %s18
      // Predicated region
      $region57: #{tpu_custom_call.1} parent=5 // pred_check
        %p540 = pneg %p539
      $region58: #{tpu_custom_call.1} parent=5 // pred_check_branch
        %542 = sbr.rel (%p540) target = $region60
      $region59: #{tpu_custom_call.1} parent=5 // pred_region
        %s543 = ssub.s32 %s18, 2
        // Predicated region
        $region61: #{tpu_custom_call.1} parent=59 // pred_check
          %p544 = pneg %p167
        $region62: #{tpu_custom_call.1} parent=59 // pred_check_branch
          %546 = sbr.rel (%p544) target = $region64
        $region63: #{tpu_custom_call.1} parent=59 // pred_region
          %s547 = sand.u32 %s152, 1
          %s548 = scalar_lea.sflag [#allocation7], %s547
          %s549 = sand.u32 %s152, 1
          %s550 = smul.addr %s549, 8
          %s551 = scalar_lea.vmem [#allocation11], %s550
          %552 = dma.done %s548, 128
        $region64: #{tpu_custom_call.1} parent=59 // pred_fallthru
          _
      $region60: #{tpu_custom_call.1} parent=5 // pred_fallthru
        _
    $region6: #{tpu_custom_call.1} parent=1 // loop_footer
      %s22 = sadd.s32 1, %s18
    $region7: #{tpu_custom_call.1} parent=1 // loop_footer_branch
      %17 = sbr.rel target = $region3
    $region8: #{tpu_custom_call.1} parent=1 // loop_exit
      _
    %553 = vsyncpa [#allocation6], 1
    %s554 = scalar_lea.sflag [#allocation6], 1
    %555 = vsyncpa %s554, 1
    %556 = vsyncpa [#allocation9], 1
    %s557 = scalar_lea.sflag [#allocation9], 1
    %558 = vsyncpa %s557, 1
    %559 = vsyncpa [#allocation7], 1
    %s560 = scalar_lea.sflag [#allocation7], 1
    %561 = vsyncpa %s560, 1

</llo_original>
